<compile_context>
chip_gen: v5e
topology: v5e:2x2
jax: 0.10.0
libtpu: 0.0.40
codegen_flags: <defaults>
</compile_context>

<pallas_src>
import functools

import jax
import jax.numpy as jnp
from jax.experimental import pallas as pl
from jax.experimental.pallas import tpu as pltpu


# ----------------------------------------------------------------------------
# Shared math helpers (pure jnp: used both inside the kernel and in the
# precision-matched reference).
# ----------------------------------------------------------------------------
def _leaky(e, alpha):
    return jnp.where(e >= 0.0, e, alpha * e)            # LeakyReLU(alpha)


def _masked_softmax_dim0(e, mask):
    # torch: softmax(where(adj>0, e, -1e12), dim=1)  -> axis 0 of the (N, N)
    # per-batch-element matrix.  Self loops guarantee every column has at
    # least one unmasked entry.
    att = jnp.where(mask, e, jnp.float32(-1.0e12))
    m = jnp.max(att, axis=0, keepdims=True)
    p = jnp.exp(att - m)
    return p / jnp.sum(p, axis=0, keepdims=True)


# ----------------------------------------------------------------------------
# Fused Pallas kernel: whole GAT forward for a block of batch elements.
# ----------------------------------------------------------------------------
def _gat_fused_kernel(x_ref, wcat_ref, wout_ref, adj_ref, out_ref, *,
                      alpha, n_heads, n_hid):
    bb, N, _ = adj_ref.shape                  # batch elements in this block
    n_class = wout_ref.shape[1] - 2
    c_pad = out_ref.shape[2]                  # lane-dense padded class axis
    fbase = n_heads * n_hid                   # start of the folded a-columns
    bf16 = jnp.bfloat16

    # ---- ONE MXU pass projects the whole batch block (bb*N rows) through the
    # stacked per-head weights + folded attention vectors.
    # wcat columns: [ W_1 .. W_H | W_1@a1_1, W_1@a2_1, ..., W_H@a1_H, W_H@a2_H ]
    hw = jnp.dot(x_ref[...], wcat_ref[...],
                 preferred_element_type=jnp.float32)     # (bb*N, H*n_hid + 2H) f32
    wout = wout_ref[...]                                 # (H*n_hid, C+2) bf16

    for b in range(bb):                # bb is tiny; TODO(synk): fori_loop if large
        mask = adj_ref[b] != 0                           # (N, N) bool from int8
        hw_b = hw[b * N:(b + 1) * N, :]                  # static, sublane-aligned

        # ---- hidden attention heads -------------------------------------
        hps = []
        for hd in range(n_heads):      # TODO(synk): fori_loop if n_heads grows
            h = hw_b[:, hd * n_hid:(hd + 1) * n_hid]             # (N, n_hid)
            f1 = hw_b[:, fbase + 2 * hd:fbase + 2 * hd + 1]      # (N, 1)
            f2 = hw_b[:, fbase + 2 * hd + 1:fbase + 2 * hd + 2]  # (N, 1)
            att = _masked_softmax_dim0(
                _leaky(f1 + jnp.transpose(f2), alpha), mask)     # (N, N) f32
            hp = jnp.dot(att.astype(bf16), h.astype(bf16),
                         preferred_element_type=jnp.float32)     # (N, n_hid)
            hps.append(jnp.maximum(hp, 0.0))                     # relu (concat=True)

        # ---- output attention layer (concat=False), a-vectors pre-folded --
        # One K = H*n_hid matmul instead of H tiny K = n_hid matmuls.
        hp_cat = jnp.concatenate(hps, axis=1)                    # (N, H*n_hid)
        hw2 = jnp.dot(hp_cat.astype(bf16), wout,
                      preferred_element_type=jnp.float32)        # (N, C+2)

        h2 = hw2[:, :n_class]                                    # (N, C)
        f1o = hw2[:, n_class:n_class + 1]                        # (N, 1)
        f2o = hw2[:, n_class + 1:n_class + 2]                    # (N, 1)
        att = _masked_softmax_dim0(
            _leaky(f1o + jnp.transpose(f2o), alpha), mask)
        h2p = jnp.dot(att.astype(bf16), h2.astype(bf16),
                      preferred_element_type=jnp.float32)        # (N, C)

        # ---- ELU + log_softmax epilogue, lane-dense padded store ----------
        y = jnp.where(h2p > 0.0, h2p, jnp.exp(jnp.minimum(h2p, 0.0)) - 1.0)
        m2 = jnp.max(y, axis=-1, keepdims=True)
        lse = jnp.log(jnp.sum(jnp.exp(y - m2), axis=-1, keepdims=True)) + m2
        logp = y - lse
        pad = jnp.zeros((N, c_pad - n_class), jnp.float32)
        out_ref[b] = jnp.concatenate([logp, pad], axis=1)        # full-width vst


# ----------------------------------------------------------------------------
# Wrapper
# ----------------------------------------------------------------------------
def gat_forward(x, adj, wcat, wout_aug, *, alpha, n_heads, n_hid,
                batch_block=None):
    B, N, Fin = x.shape
    n_class = wout_aug.shape[1] - 2
    c_pad = 128                       # lane-dense padded class axis (sliced off)

    if batch_block is None:
        # Largest divisor of B that keeps the projection matmul fed with about
        # 128 rows.  (When B is large, pick batch_block <= B//2 so the parallel
        # grid axis has >= 2 steps and both v7x TensorCores get work.)
        target = max(1, 128 // max(N, 1))
        batch_block = 1
        for cand in range(1, B + 1):
            if B % cand == 0 and cand <= target:
                batch_block = cand
    assert B % batch_block == 0

    # bf16 MXU operands, int8 adjacency mask (4x less HBM than f32 adj).
    x2 = x.reshape(B * N, Fin).astype(jnp.bfloat16)
    adj_mask = (adj > 0).astype(jnp.int8)
    wcat_b = wcat.astype(jnp.bfloat16)
    wout_b = wout_aug.astype(jnp.bfloat16)

    kernel = functools.partial(_gat_fused_kernel, alpha=alpha,
                               n_heads=n_heads, n_hid=n_hid)
    out_padded = pl.pallas_call(
        kernel,
        out_shape=jax.ShapeDtypeStruct((B, N, c_pad), jnp.float32),
        grid=(B // batch_block,),
        in_specs=[
            pl.BlockSpec((batch_block * N, Fin), lambda b: (b, 0)),            # x (B*N, Fin)
            pl.BlockSpec((Fin, wcat.shape[1]), lambda b: (0, 0)),              # [W|W@a1|W@a2] stacked
            pl.BlockSpec((n_heads * n_hid, n_class + 2), lambda b: (0, 0)),    # [W_out|W_out@a1|W_out@a2]
            pl.BlockSpec((batch_block, N, N), lambda b: (b, 0, 0)),            # int8 adjacency mask
        ],
        out_specs=pl.BlockSpec((batch_block, N, c_pad), lambda b: (b, 0, 0)),
        compiler_params=pltpu.CompilerParams(
            dimension_semantics=("parallel",),          # v7x: shard batch over TCs
            vmem_limit_bytes=32 * 1024 * 1024,          # raise when scaling N (v6e)
        ),
    )(x2, wcat_b, wout_b, adj_mask)
    return out_padded[:, :, :n_class]


# ----------------------------------------------------------------------------
# Parameter construction (deterministic xavier_uniform, gain=1.414) + folding
# ----------------------------------------------------------------------------
def xavier_uniform(key, shape, gain=1.414):
    fan_in, fan_out = shape[0], shape[1]
    bound = gain * jnp.sqrt(6.0 / (fan_in + fan_out))
    return jax.random.uniform(key, shape, jnp.float32, -bound, bound)


def make_gat_params(key, n_feat, n_hid, n_class, n_heads):
    params = {"heads": [], "out": None}
    keys = jax.random.split(key, 2 * n_heads + 2)
    for i in range(n_heads):
        W = xavier_uniform(keys[2 * i], (n_feat, n_hid))
        a = xavier_uniform(keys[2 * i + 1], (2 * n_hid, 1))
        params["heads"].append((W, a))
    W_out = xavier_uniform(keys[-2], (n_hid * n_heads, n_class))
    a_out = xavier_uniform(keys[-1], (2 * n_class, 1))
    params["out"] = (W_out, a_out)
    return params


def fold_params(params, n_hid):
    """Fold a1/a2 into the projection matmuls; head-aligned column order:
    wcat = [ W_1 .. W_H | W_1@a1_1, W_1@a2_1, ..., W_H@a1_H, W_H@a2_H ]."""
    w_blocks, f_blocks = [], []
    for (W, a) in params["heads"]:
        a1, a2 = a[:n_hid], a[n_hid:]
        w_blocks.append(W)
        f_blocks.append(W @ a1)
        f_blocks.append(W @ a2)
    wcat = jnp.concatenate(w_blocks + f_blocks, axis=1)   # (Fin, H*n_hid + 2H)
    W_out, a_out = params["out"]
    C = W_out.shape[1]
    a1o, a2o = a_out[:C], a_out[C:]
    wout_aug = jnp.concatenate([W_out, W_out @ a1o, W_out @ a2o], axis=1)
    return wcat, wout_aug                                  # (H*n_hid, C+2)


# ----------------------------------------------------------------------------
# Precision-matched pure-JAX reference: same folded weights, same bf16 MXU
# operands, same f32 elementwise math as the kernel.  Used for a tight check.
# ----------------------------------------------------------------------------
def _matched_ref_forward(x, adj, wcat, wout_aug, alpha, n_heads, n_hid):
    bf16 = jnp.bfloat16
    B, N, Fin = x.shape
    n_class = wout_aug.shape[1] - 2
    fbase = n_heads * n_hid
    hw = jnp.dot(x.reshape(B * N, Fin).astype(bf16), wcat.astype(bf16),
                 preferred_element_type=jnp.float32)
    wout = wout_aug.astype(bf16)
    outs = []
    for b in range(B):
        mask = adj[b] > 0.0
        hw_b = hw[b * N:(b + 1) * N, :]
        hps = []
        for hd in range(n_heads):
            h = hw_b[:, hd * n_hid:(hd + 1) * n_hid]
            f1 = hw_b[:, fbase + 2 * hd:fbase + 2 * hd + 1]
            f2 = hw_b[:, fbase + 2 * hd + 1:fbase + 2 * hd + 2]
            att = _masked_softmax_dim0(_leaky(f1 + f2.T, alpha), mask)
            hp = jnp.dot(att.astype(bf16), h.astype(bf16),
                         preferred_element_type=jnp.float32)
            hps.append(jnp.maximum(hp, 0.0))
        hp_cat = jnp.concatenate(hps, axis=1)
        hw2 = jnp.dot(hp_cat.astype(bf16), wout, preferred_element_type=jnp.float32)
        h2 = hw2[:, :n_class]
        f1o = hw2[:, n_class:n_class + 1]
        f2o = hw2[:, n_class + 1:n_class + 2]
        att = _masked_softmax_dim0(_leaky(f1o + f2o.T, alpha), mask)
        h2p = jnp.dot(att.astype(bf16), h2.astype(bf16),
                      preferred_element_type=jnp.float32)
        y = jnp.where(h2p > 0.0, h2p, jnp.exp(jnp.minimum(h2p, 0.0)) - 1.0)
        outs.append(y - jax.nn.logsumexp(y, axis=-1, keepdims=True))
    return jnp.stack(outs, axis=0)


# ----------------------------------------------------------------------------
# Full-f32 pure-JAX reference (PyTorch semantics, eval mode) for a sanity check.
# ----------------------------------------------------------------------------
def _ref_layer(x, adj, W, a, alpha, concat):
    h = x @ W
    Fh = W.shape[1]
    f1, f2 = h @ a[:Fh], h @ a[Fh:]
    e = f1 + jnp.swapaxes(f2, 1, 2)
    e = jnp.where(e >= 0.0, e, alpha * e)
    att = jnp.where(adj > 0.0, e, -1.0e12)
    att = jax.nn.softmax(att, axis=1)                    # torch dim=1
    hp = att @ h
    return jnp.maximum(hp, 0.0) if concat else hp


def _ref_forward(params, x, adj, alpha):
    hs = [_ref_layer(x, adj, W, a, alpha, True) for (W, a) in params["heads"]]
    xcat = jnp.concatenate(hs, axis=2)
    W_out, a_out = params["out"]
    out = _ref_layer(xcat, adj, W_out, a_out, alpha, False)
    out = jax.nn.elu(out)
    return jax.nn.log_softmax(out, axis=2)


# ----------------------------------------------------------------------------
if __name__ == "__main__":
    B, N = 2, 8
    n_feat, n_hid, n_class, n_heads = 16, 8, 4, 2
    dropout, alpha = 0.5, 0.2                 # dropout is identity in eval mode

    key = jax.random.PRNGKey(0)
    k_x, k_adj, k_p = jax.random.split(key, 3)

    x = jax.random.normal(k_x, (B, N, n_feat), jnp.float32)
    adj = (jax.random.uniform(k_adj, (B, N, N)) > 0.5).astype(jnp.float32)
    adj = jnp.minimum(adj + jnp.eye(N, dtype=jnp.float32)[None], 1.0)   # self loops

    params = make_gat_params(k_p, n_feat, n_hid, n_class, n_heads)
    wcat, wout_aug = fold_params(params, n_hid)

    out = gat_forward(x, adj, wcat, wout_aug,
                      alpha=alpha, n_heads=n_heads, n_hid=n_hid)
    jax.block_until_ready(out)
    assert out.shape == (B, N, n_class)

    # Tight check: kernel vs a pure-JAX mirror of the exact same math
    # (folded weights, bf16 MXU operands, f32 accumulation / elementwise).
    matched = _matched_ref_forward(x, adj, wcat, wout_aug, alpha, n_heads, n_hid)
    assert jnp.allclose(out, matched, atol=1e-3, rtol=1e-3), \
        f"max abs diff vs matched ref {jnp.max(jnp.abs(out - matched))}"

    # Sanity check: kernel vs the full-f32 PyTorch-semantics reference.
    # bf16 MXU operands introduce ~1e-2-scale deviations, hence loose bound.
    ref = _ref_forward(params, x, adj, alpha)
    assert jnp.max(jnp.abs(out - ref)) < 1e-1, \
        f"max abs diff vs f32 ref {jnp.max(jnp.abs(out - ref))}"

    print("KERNEL_OK")
</pallas_src>

<mosaic_0001>
module attributes {stable_mosaic.version = 11 : i64} {
  func.func @_gat_fused_kernel(%arg0: i32, %arg1: memref<16x16xbf16, #tpu.memory_space<vmem>>, %arg2: memref<16x20xbf16, #tpu.memory_space<vmem>>, %arg3: memref<16x6xbf16, #tpu.memory_space<vmem>>, %arg4: memref<2x8x8xi8, #tpu.memory_space<vmem>>, %arg5: memref<2x8x128xf32, #tpu.memory_space<vmem>>) attributes {dimension_semantics = [#tpu.dimension_semantics<parallel>], iteration_bounds = array<i64: 1>, scalar_prefetch = 0 : i64, scratch_operands = 0 : i64, tpu.core_type = #tpu.core_type<tc>, window_params = [{transform_indices = @transform_0, window_bounds = array<i64: 16, 16>}, {pipeline_mode = #tpu.pipeline_mode<synchronous>, transform_indices = @transform_1, window_bounds = array<i64: 16, 20>}, {pipeline_mode = #tpu.pipeline_mode<synchronous>, transform_indices = @transform_2, window_bounds = array<i64: 16, 6>}, {transform_indices = @transform_3, window_bounds = array<i64: 2, 8, 8>}, {transform_indices = @transform_4, window_bounds = array<i64: 2, 8, 128>}]} {
    %c0 = arith.constant 0 : index
    %c0_0 = arith.constant 0 : index
    %0 = vector.load %arg1[%c0, %c0_0] : memref<16x16xbf16, #tpu.memory_space<vmem>>, vector<16x16xbf16>
    %c0_1 = arith.constant 0 : index
    %c0_2 = arith.constant 0 : index
    %1 = vector.load %arg2[%c0_1, %c0_2] : memref<16x20xbf16, #tpu.memory_space<vmem>>, vector<16x20xbf16>
    %cst = arith.constant dense<0.000000e+00> : vector<16x20xf32>
    %2 = tpu.matmul %0, %1, %cst {dimension_numbers = #tpu.dot_dimension_numbers<[1], [0], [0], [1], [0, 0, 1, 1], [], []>} : vector<16x16xbf16>, vector<16x20xbf16>, vector<16x20xf32> -> vector<16x20xf32>
    %c0_3 = arith.constant 0 : index
    %c0_4 = arith.constant 0 : index
    %3 = vector.load %arg3[%c0_3, %c0_4] : memref<16x6xbf16, #tpu.memory_space<vmem>>, vector<16x6xbf16>
    %c0_5 = arith.constant 0 : index
    %c0_6 = arith.constant 0 : index
    %c0_7 = arith.constant 0 : index
    %4 = vector.load %arg4[%c0_5, %c0_6, %c0_7] : memref<2x8x8xi8, #tpu.memory_space<vmem>>, vector<1x8x8xi8>
    %5 = vector.shape_cast %4 : vector<1x8x8xi8> to vector<8x8xi8>
    %c0_i8 = arith.constant 0 : i8
    %6 = vector.broadcast %c0_i8 : i8 to vector<8x8xi8>
    %7 = arith.cmpi ne, %5, %6 : vector<8x8xi8>
    %8 = vector.extract_strided_slice %2 {offsets = [0, 0], sizes = [8, 20], strides = [1, 1]} : vector<16x20xf32> to vector<8x20xf32>
    %9 = vector.extract_strided_slice %8 {offsets = [0, 0], sizes = [8, 8], strides = [1, 1]} : vector<8x20xf32> to vector<8x8xf32>
    %10 = vector.extract_strided_slice %8 {offsets = [0, 16], sizes = [8, 1], strides = [1, 1]} : vector<8x20xf32> to vector<8x1xf32>
    %11 = vector.extract_strided_slice %8 {offsets = [0, 17], sizes = [8, 1], strides = [1, 1]} : vector<8x20xf32> to vector<8x1xf32>
    %12 = tpu.transpose %11, [1, 0] : vector<8x1xf32> -> vector<1x8xf32>
    %13 = vector.broadcast %10 : vector<8x1xf32> to vector<8x8xf32>
    %14 = vector.broadcast %12 : vector<1x8xf32> to vector<8x8xf32>
    %15 = arith.addf %13, %14 : vector<8x8xf32>
    %cst_8 = arith.constant 0.000000e+00 : f32
    %16 = vector.broadcast %cst_8 : f32 to vector<8x8xf32>
    %17 = arith.cmpf oge, %15, %16 : vector<8x8xf32>
    %cst_9 = arith.constant 2.000000e-01 : f32
    %18 = vector.broadcast %cst_9 : f32 to vector<8x8xf32>
    %19 = arith.mulf %18, %15 : vector<8x8xf32>
    %20 = arith.select %17, %15, %19 : vector<8x8xi1>, vector<8x8xf32>
    %cst_10 = arith.constant -9.99999995E+11 : f32
    %21 = vector.broadcast %cst_10 : f32 to vector<8x8xf32>
    %22 = arith.select %7, %20, %21 : vector<8x8xi1>, vector<8x8xf32>
    %cst_11 = arith.constant dense<0xFF800000> : vector<8xf32>
    %23 = vector.multi_reduction <maximumf>, %22, %cst_11 [0] : vector<8x8xf32> to vector<8xf32>
    %24 = vector.shape_cast %23 : vector<8xf32> to vector<1x8xf32>
    %25 = vector.broadcast %24 : vector<1x8xf32> to vector<8x8xf32>
    %26 = arith.subf %22, %25 : vector<8x8xf32>
    %27 = math.exp %26 : vector<8x8xf32>
    %cst_12 = arith.constant dense<0.000000e+00> : vector<8xf32>
    %28 = vector.multi_reduction <add>, %27, %cst_12 [0] : vector<8x8xf32> to vector<8xf32>
    %29 = vector.shape_cast %28 : vector<8xf32> to vector<1x8xf32>
    %30 = vector.broadcast %29 : vector<1x8xf32> to vector<8x8xf32>
    %31 = arith.divf %27, %30 : vector<8x8xf32>
    %32 = arith.truncf %31 : vector<8x8xf32> to vector<8x8xbf16>
    %33 = arith.truncf %9 : vector<8x8xf32> to vector<8x8xbf16>
    %cst_13 = arith.constant dense<0.000000e+00> : vector<8x8xf32>
    %34 = tpu.matmul %32, %33, %cst_13 {dimension_numbers = #tpu.dot_dimension_numbers<[1], [0], [0], [1], [0, 0, 1, 1], [], []>} : vector<8x8xbf16>, vector<8x8xbf16>, vector<8x8xf32> -> vector<8x8xf32>
    %cst_14 = arith.constant 0.000000e+00 : f32
    %35 = vector.broadcast %cst_14 : f32 to vector<8x8xf32>
    %36 = arith.maximumf %34, %35 : vector<8x8xf32>
    %37 = vector.extract_strided_slice %8 {offsets = [0, 8], sizes = [8, 8], strides = [1, 1]} : vector<8x20xf32> to vector<8x8xf32>
    %38 = vector.extract_strided_slice %8 {offsets = [0, 18], sizes = [8, 1], strides = [1, 1]} : vector<8x20xf32> to vector<8x1xf32>
    %39 = vector.extract_strided_slice %8 {offsets = [0, 19], sizes = [8, 1], strides = [1, 1]} : vector<8x20xf32> to vector<8x1xf32>
    %40 = tpu.transpose %39, [1, 0] : vector<8x1xf32> -> vector<1x8xf32>
    %41 = vector.broadcast %38 : vector<8x1xf32> to vector<8x8xf32>
    %42 = vector.broadcast %40 : vector<1x8xf32> to vector<8x8xf32>
    %43 = arith.addf %41, %42 : vector<8x8xf32>
    %cst_15 = arith.constant 0.000000e+00 : f32
    %44 = vector.broadcast %cst_15 : f32 to vector<8x8xf32>
    %45 = arith.cmpf oge, %43, %44 : vector<8x8xf32>
    %cst_16 = arith.constant 2.000000e-01 : f32
    %46 = vector.broadcast %cst_16 : f32 to vector<8x8xf32>
    %47 = arith.mulf %46, %43 : vector<8x8xf32>
    %48 = arith.select %45, %43, %47 : vector<8x8xi1>, vector<8x8xf32>
    %cst_17 = arith.constant -9.99999995E+11 : f32
    %49 = vector.broadcast %cst_17 : f32 to vector<8x8xf32>
    %50 = arith.select %7, %48, %49 : vector<8x8xi1>, vector<8x8xf32>
    %cst_18 = arith.constant dense<0xFF800000> : vector<8xf32>
    %51 = vector.multi_reduction <maximumf>, %50, %cst_18 [0] : vector<8x8xf32> to vector<8xf32>
    %52 = vector.shape_cast %51 : vector<8xf32> to vector<1x8xf32>
    %53 = vector.broadcast %52 : vector<1x8xf32> to vector<8x8xf32>
    %54 = arith.subf %50, %53 : vector<8x8xf32>
    %55 = math.exp %54 : vector<8x8xf32>
    %cst_19 = arith.constant dense<0.000000e+00> : vector<8xf32>
    %56 = vector.multi_reduction <add>, %55, %cst_19 [0] : vector<8x8xf32> to vector<8xf32>
    %57 = vector.shape_cast %56 : vector<8xf32> to vector<1x8xf32>
    %58 = vector.broadcast %57 : vector<1x8xf32> to vector<8x8xf32>
    %59 = arith.divf %55, %58 : vector<8x8xf32>
    %60 = arith.truncf %59 : vector<8x8xf32> to vector<8x8xbf16>
    %61 = arith.truncf %37 : vector<8x8xf32> to vector<8x8xbf16>
    %cst_20 = arith.constant dense<0.000000e+00> : vector<8x8xf32>
    %62 = tpu.matmul %60, %61, %cst_20 {dimension_numbers = #tpu.dot_dimension_numbers<[1], [0], [0], [1], [0, 0, 1, 1], [], []>} : vector<8x8xbf16>, vector<8x8xbf16>, vector<8x8xf32> -> vector<8x8xf32>
    %cst_21 = arith.constant 0.000000e+00 : f32
    %63 = vector.broadcast %cst_21 : f32 to vector<8x8xf32>
    %64 = arith.maximumf %62, %63 : vector<8x8xf32>
    %65 = tpu.concatenate %36, %64 in 1 : vector<8x8xf32>, vector<8x8xf32> -> vector<8x16xf32>
    %66 = arith.truncf %65 : vector<8x16xf32> to vector<8x16xbf16>
    %cst_22 = arith.constant dense<0.000000e+00> : vector<8x6xf32>
    %67 = tpu.matmul %66, %3, %cst_22 {dimension_numbers = #tpu.dot_dimension_numbers<[1], [0], [0], [1], [0, 0, 1, 1], [], []>} : vector<8x16xbf16>, vector<16x6xbf16>, vector<8x6xf32> -> vector<8x6xf32>
    %68 = vector.extract_strided_slice %67 {offsets = [0, 0], sizes = [8, 4], strides = [1, 1]} : vector<8x6xf32> to vector<8x4xf32>
    %69 = vector.extract_strided_slice %67 {offsets = [0, 4], sizes = [8, 1], strides = [1, 1]} : vector<8x6xf32> to vector<8x1xf32>
    %70 = vector.extract_strided_slice %67 {offsets = [0, 5], sizes = [8, 1], strides = [1, 1]} : vector<8x6xf32> to vector<8x1xf32>
    %71 = tpu.transpose %70, [1, 0] : vector<8x1xf32> -> vector<1x8xf32>
    %72 = vector.broadcast %69 : vector<8x1xf32> to vector<8x8xf32>
    %73 = vector.broadcast %71 : vector<1x8xf32> to vector<8x8xf32>
    %74 = arith.addf %72, %73 : vector<8x8xf32>
    %cst_23 = arith.constant 0.000000e+00 : f32
    %75 = vector.broadcast %cst_23 : f32 to vector<8x8xf32>
    %76 = arith.cmpf oge, %74, %75 : vector<8x8xf32>
    %cst_24 = arith.constant 2.000000e-01 : f32
    %77 = vector.broadcast %cst_24 : f32 to vector<8x8xf32>
    %78 = arith.mulf %77, %74 : vector<8x8xf32>
    %79 = arith.select %76, %74, %78 : vector<8x8xi1>, vector<8x8xf32>
    %cst_25 = arith.constant -9.99999995E+11 : f32
    %80 = vector.broadcast %cst_25 : f32 to vector<8x8xf32>
    %81 = arith.select %7, %79, %80 : vector<8x8xi1>, vector<8x8xf32>
    %cst_26 = arith.constant dense<0xFF800000> : vector<8xf32>
    %82 = vector.multi_reduction <maximumf>, %81, %cst_26 [0] : vector<8x8xf32> to vector<8xf32>
    %83 = vector.shape_cast %82 : vector<8xf32> to vector<1x8xf32>
    %84 = vector.broadcast %83 : vector<1x8xf32> to vector<8x8xf32>
    %85 = arith.subf %81, %84 : vector<8x8xf32>
    %86 = math.exp %85 : vector<8x8xf32>
    %cst_27 = arith.constant dense<0.000000e+00> : vector<8xf32>
    %87 = vector.multi_reduction <add>, %86, %cst_27 [0] : vector<8x8xf32> to vector<8xf32>
    %88 = vector.shape_cast %87 : vector<8xf32> to vector<1x8xf32>
    %89 = vector.broadcast %88 : vector<1x8xf32> to vector<8x8xf32>
    %90 = arith.divf %86, %89 : vector<8x8xf32>
    %91 = arith.truncf %90 : vector<8x8xf32> to vector<8x8xbf16>
    %92 = arith.truncf %68 : vector<8x4xf32> to vector<8x4xbf16>
    %cst_28 = arith.constant dense<0.000000e+00> : vector<8x4xf32>
    %93 = tpu.matmul %91, %92, %cst_28 {dimension_numbers = #tpu.dot_dimension_numbers<[1], [0], [0], [1], [0, 0, 1, 1], [], []>} : vector<8x8xbf16>, vector<8x4xbf16>, vector<8x4xf32> -> vector<8x4xf32>
    %cst_29 = arith.constant 0.000000e+00 : f32
    %94 = vector.broadcast %cst_29 : f32 to vector<8x4xf32>
    %95 = arith.cmpf ogt, %93, %94 : vector<8x4xf32>
    %cst_30 = arith.constant 0.000000e+00 : f32
    %96 = vector.broadcast %cst_30 : f32 to vector<8x4xf32>
    %97 = arith.minimumf %93, %96 : vector<8x4xf32>
    %98 = math.exp %97 : vector<8x4xf32>
    %cst_31 = arith.constant 1.000000e+00 : f32
    %99 = vector.broadcast %cst_31 : f32 to vector<8x4xf32>
    %100 = arith.subf %98, %99 : vector<8x4xf32>
    %101 = arith.select %95, %93, %100 : vector<8x4xi1>, vector<8x4xf32>
    %cst_32 = arith.constant dense<0xFF800000> : vector<8xf32>
    %102 = vector.multi_reduction <maximumf>, %101, %cst_32 [1] : vector<8x4xf32> to vector<8xf32>
    %103 = vector.shape_cast %102 : vector<8xf32> to vector<8x1xf32>
    %104 = vector.broadcast %103 : vector<8x1xf32> to vector<8x4xf32>
    %105 = arith.subf %101, %104 : vector<8x4xf32>
    %106 = math.exp %105 : vector<8x4xf32>
    %cst_33 = arith.constant dense<0.000000e+00> : vector<8xf32>
    %107 = vector.multi_reduction <add>, %106, %cst_33 [1] : vector<8x4xf32> to vector<8xf32>
    %108 = vector.shape_cast %107 : vector<8xf32> to vector<8x1xf32>
    %109 = math.log %108 : vector<8x1xf32>
    %110 = arith.addf %109, %103 : vector<8x1xf32>
    %111 = vector.broadcast %110 : vector<8x1xf32> to vector<8x4xf32>
    %112 = arith.subf %101, %111 : vector<8x4xf32>
    %cst_34 = arith.constant 0.000000e+00 : f32
    %113 = vector.broadcast %cst_34 : f32 to vector<8x124xf32>
    %114 = tpu.concatenate %112, %113 in 1 : vector<8x4xf32>, vector<8x124xf32> -> vector<8x128xf32>
    %c0_35 = arith.constant 0 : index
    %c0_36 = arith.constant 0 : index
    %c0_37 = arith.constant 0 : index
    %115 = vector.load %arg5[%c0_35, %c0_36, %c0_37] : memref<2x8x128xf32, #tpu.memory_space<vmem>>, vector<1x8x128xf32>
    %116 = vector.shape_cast %115 : vector<1x8x128xf32> to vector<8x128xf32>
    %117 = vector.shape_cast %114 : vector<8x128xf32> to vector<1x8x128xf32>
    tpu.vector_store %arg5[%c0_35, %c0_36, %c0_37], %117 {strides = array<i32>} : memref<2x8x128xf32, #tpu.memory_space<vmem>>, vector<1x8x128xf32>,
    %c1 = arith.constant 1 : index
    %c0_38 = arith.constant 0 : index
    %c0_39 = arith.constant 0 : index
    %118 = vector.load %arg4[%c1, %c0_38, %c0_39] : memref<2x8x8xi8, #tpu.memory_space<vmem>>, vector<1x8x8xi8>
    %119 = vector.shape_cast %118 : vector<1x8x8xi8> to vector<8x8xi8>
    %c0_i8_40 = arith.constant 0 : i8
    %120 = vector.broadcast %c0_i8_40 : i8 to vector<8x8xi8>
    %121 = arith.cmpi ne, %119, %120 : vector<8x8xi8>
    %122 = vector.extract_strided_slice %2 {offsets = [8, 0], sizes = [8, 20], strides = [1, 1]} : vector<16x20xf32> to vector<8x20xf32>
    %123 = vector.extract_strided_slice %122 {offsets = [0, 0], sizes = [8, 8], strides = [1, 1]} : vector<8x20xf32> to vector<8x8xf32>
    %124 = vector.extract_strided_slice %122 {offsets = [0, 16], sizes = [8, 1], strides = [1, 1]} : vector<8x20xf32> to vector<8x1xf32>
    %125 = vector.extract_strided_slice %122 {offsets = [0, 17], sizes = [8, 1], strides = [1, 1]} : vector<8x20xf32> to vector<8x1xf32>
    %126 = tpu.transpose %125, [1, 0] : vector<8x1xf32> -> vector<1x8xf32>
    %127 = vector.broadcast %124 : vector<8x1xf32> to vector<8x8xf32>
    %128 = vector.broadcast %126 : vector<1x8xf32> to vector<8x8xf32>
    %129 = arith.addf %127, %128 : vector<8x8xf32>
    %cst_41 = arith.constant 0.000000e+00 : f32
    %130 = vector.broadcast %cst_41 : f32 to vector<8x8xf32>
    %131 = arith.cmpf oge, %129, %130 : vector<8x8xf32>
    %cst_42 = arith.constant 2.000000e-01 : f32
    %132 = vector.broadcast %cst_42 : f32 to vector<8x8xf32>
    %133 = arith.mulf %132, %129 : vector<8x8xf32>
    %134 = arith.select %131, %129, %133 : vector<8x8xi1>, vector<8x8xf32>
    %cst_43 = arith.constant -9.99999995E+11 : f32
    %135 = vector.broadcast %cst_43 : f32 to vector<8x8xf32>
    %136 = arith.select %121, %134, %135 : vector<8x8xi1>, vector<8x8xf32>
    %cst_44 = arith.constant dense<0xFF800000> : vector<8xf32>
    %137 = vector.multi_reduction <maximumf>, %136, %cst_44 [0] : vector<8x8xf32> to vector<8xf32>
    %138 = vector.shape_cast %137 : vector<8xf32> to vector<1x8xf32>
    %139 = vector.broadcast %138 : vector<1x8xf32> to vector<8x8xf32>
    %140 = arith.subf %136, %139 : vector<8x8xf32>
    %141 = math.exp %140 : vector<8x8xf32>
    %cst_45 = arith.constant dense<0.000000e+00> : vector<8xf32>
    %142 = vector.multi_reduction <add>, %141, %cst_45 [0] : vector<8x8xf32> to vector<8xf32>
    %143 = vector.shape_cast %142 : vector<8xf32> to vector<1x8xf32>
    %144 = vector.broadcast %143 : vector<1x8xf32> to vector<8x8xf32>
    %145 = arith.divf %141, %144 : vector<8x8xf32>
    %146 = arith.truncf %145 : vector<8x8xf32> to vector<8x8xbf16>
    %147 = arith.truncf %123 : vector<8x8xf32> to vector<8x8xbf16>
    %cst_46 = arith.constant dense<0.000000e+00> : vector<8x8xf32>
    %148 = tpu.matmul %146, %147, %cst_46 {dimension_numbers = #tpu.dot_dimension_numbers<[1], [0], [0], [1], [0, 0, 1, 1], [], []>} : vector<8x8xbf16>, vector<8x8xbf16>, vector<8x8xf32> -> vector<8x8xf32>
    %cst_47 = arith.constant 0.000000e+00 : f32
    %149 = vector.broadcast %cst_47 : f32 to vector<8x8xf32>
    %150 = arith.maximumf %148, %149 : vector<8x8xf32>
    %151 = vector.extract_strided_slice %122 {offsets = [0, 8], sizes = [8, 8], strides = [1, 1]} : vector<8x20xf32> to vector<8x8xf32>
    %152 = vector.extract_strided_slice %122 {offsets = [0, 18], sizes = [8, 1], strides = [1, 1]} : vector<8x20xf32> to vector<8x1xf32>
    %153 = vector.extract_strided_slice %122 {offsets = [0, 19], sizes = [8, 1], strides = [1, 1]} : vector<8x20xf32> to vector<8x1xf32>
    %154 = tpu.transpose %153, [1, 0] : vector<8x1xf32> -> vector<1x8xf32>
    %155 = vector.broadcast %152 : vector<8x1xf32> to vector<8x8xf32>
    %156 = vector.broadcast %154 : vector<1x8xf32> to vector<8x8xf32>
    %157 = arith.addf %155, %156 : vector<8x8xf32>
    %cst_48 = arith.constant 0.000000e+00 : f32
    %158 = vector.broadcast %cst_48 : f32 to vector<8x8xf32>
    %159 = arith.cmpf oge, %157, %158 : vector<8x8xf32>
    %cst_49 = arith.constant 2.000000e-01 : f32
    %160 = vector.broadcast %cst_49 : f32 to vector<8x8xf32>
    %161 = arith.mulf %160, %157 : vector<8x8xf32>
    %162 = arith.select %159, %157, %161 : vector<8x8xi1>, vector<8x8xf32>
    %cst_50 = arith.constant -9.99999995E+11 : f32
    %163 = vector.broadcast %cst_50 : f32 to vector<8x8xf32>
    %164 = arith.select %121, %162, %163 : vector<8x8xi1>, vector<8x8xf32>
    %cst_51 = arith.constant dense<0xFF800000> : vector<8xf32>
    %165 = vector.multi_reduction <maximumf>, %164, %cst_51 [0] : vector<8x8xf32> to vector<8xf32>
    %166 = vector.shape_cast %165 : vector<8xf32> to vector<1x8xf32>
    %167 = vector.broadcast %166 : vector<1x8xf32> to vector<8x8xf32>
    %168 = arith.subf %164, %167 : vector<8x8xf32>
    %169 = math.exp %168 : vector<8x8xf32>
    %cst_52 = arith.constant dense<0.000000e+00> : vector<8xf32>
    %170 = vector.multi_reduction <add>, %169, %cst_52 [0] : vector<8x8xf32> to vector<8xf32>
    %171 = vector.shape_cast %170 : vector<8xf32> to vector<1x8xf32>
    %172 = vector.broadcast %171 : vector<1x8xf32> to vector<8x8xf32>
    %173 = arith.divf %169, %172 : vector<8x8xf32>
    %174 = arith.truncf %173 : vector<8x8xf32> to vector<8x8xbf16>
    %175 = arith.truncf %151 : vector<8x8xf32> to vector<8x8xbf16>
    %cst_53 = arith.constant dense<0.000000e+00> : vector<8x8xf32>
    %176 = tpu.matmul %174, %175, %cst_53 {dimension_numbers = #tpu.dot_dimension_numbers<[1], [0], [0], [1], [0, 0, 1, 1], [], []>} : vector<8x8xbf16>, vector<8x8xbf16>, vector<8x8xf32> -> vector<8x8xf32>
    %cst_54 = arith.constant 0.000000e+00 : f32
    %177 = vector.broadcast %cst_54 : f32 to vector<8x8xf32>
    %178 = arith.maximumf %176, %177 : vector<8x8xf32>
    %179 = tpu.concatenate %150, %178 in 1 : vector<8x8xf32>, vector<8x8xf32> -> vector<8x16xf32>
    %180 = arith.truncf %179 : vector<8x16xf32> to vector<8x16xbf16>
    %cst_55 = arith.constant dense<0.000000e+00> : vector<8x6xf32>
    %181 = tpu.matmul %180, %3, %cst_55 {dimension_numbers = #tpu.dot_dimension_numbers<[1], [0], [0], [1], [0, 0, 1, 1], [], []>} : vector<8x16xbf16>, vector<16x6xbf16>, vector<8x6xf32> -> vector<8x6xf32>
    %182 = vector.extract_strided_slice %181 {offsets = [0, 0], sizes = [8, 4], strides = [1, 1]} : vector<8x6xf32> to vector<8x4xf32>
    %183 = vector.extract_strided_slice %181 {offsets = [0, 4], sizes = [8, 1], strides = [1, 1]} : vector<8x6xf32> to vector<8x1xf32>
    %184 = vector.extract_strided_slice %181 {offsets = [0, 5], sizes = [8, 1], strides = [1, 1]} : vector<8x6xf32> to vector<8x1xf32>
    %185 = tpu.transpose %184, [1, 0] : vector<8x1xf32> -> vector<1x8xf32>
    %186 = vector.broadcast %183 : vector<8x1xf32> to vector<8x8xf32>
    %187 = vector.broadcast %185 : vector<1x8xf32> to vector<8x8xf32>
    %188 = arith.addf %186, %187 : vector<8x8xf32>
    %cst_56 = arith.constant 0.000000e+00 : f32
    %189 = vector.broadcast %cst_56 : f32 to vector<8x8xf32>
    %190 = arith.cmpf oge, %188, %189 : vector<8x8xf32>
    %cst_57 = arith.constant 2.000000e-01 : f32
    %191 = vector.broadcast %cst_57 : f32 to vector<8x8xf32>
    %192 = arith.mulf %191, %188 : vector<8x8xf32>
    %193 = arith.select %190, %188, %192 : vector<8x8xi1>, vector<8x8xf32>
    %cst_58 = arith.constant -9.99999995E+11 : f32
    %194 = vector.broadcast %cst_58 : f32 to vector<8x8xf32>
    %195 = arith.select %121, %193, %194 : vector<8x8xi1>, vector<8x8xf32>
    %cst_59 = arith.constant dense<0xFF800000> : vector<8xf32>
    %196 = vector.multi_reduction <maximumf>, %195, %cst_59 [0] : vector<8x8xf32> to vector<8xf32>
    %197 = vector.shape_cast %196 : vector<8xf32> to vector<1x8xf32>
    %198 = vector.broadcast %197 : vector<1x8xf32> to vector<8x8xf32>
    %199 = arith.subf %195, %198 : vector<8x8xf32>
    %200 = math.exp %199 : vector<8x8xf32>
    %cst_60 = arith.constant dense<0.000000e+00> : vector<8xf32>
    %201 = vector.multi_reduction <add>, %200, %cst_60 [0] : vector<8x8xf32> to vector<8xf32>
    %202 = vector.shape_cast %201 : vector<8xf32> to vector<1x8xf32>
    %203 = vector.broadcast %202 : vector<1x8xf32> to vector<8x8xf32>
    %204 = arith.divf %200, %203 : vector<8x8xf32>
    %205 = arith.truncf %204 : vector<8x8xf32> to vector<8x8xbf16>
    %206 = arith.truncf %182 : vector<8x4xf32> to vector<8x4xbf16>
    %cst_61 = arith.constant dense<0.000000e+00> : vector<8x4xf32>
    %207 = tpu.matmul %205, %206, %cst_61 {dimension_numbers = #tpu.dot_dimension_numbers<[1], [0], [0], [1], [0, 0, 1, 1], [], []>} : vector<8x8xbf16>, vector<8x4xbf16>, vector<8x4xf32> -> vector<8x4xf32>
    %cst_62 = arith.constant 0.000000e+00 : f32
    %208 = vector.broadcast %cst_62 : f32 to vector<8x4xf32>
    %209 = arith.cmpf ogt, %207, %208 : vector<8x4xf32>
    %cst_63 = arith.constant 0.000000e+00 : f32
    %210 = vector.broadcast %cst_63 : f32 to vector<8x4xf32>
    %211 = arith.minimumf %207, %210 : vector<8x4xf32>
    %212 = math.exp %211 : vector<8x4xf32>
    %cst_64 = arith.constant 1.000000e+00 : f32
    %213 = vector.broadcast %cst_64 : f32 to vector<8x4xf32>
    %214 = arith.subf %212, %213 : vector<8x4xf32>
    %215 = arith.select %209, %207, %214 : vector<8x4xi1>, vector<8x4xf32>
    %cst_65 = arith.constant dense<0xFF800000> : vector<8xf32>
    %216 = vector.multi_reduction <maximumf>, %215, %cst_65 [1] : vector<8x4xf32> to vector<8xf32>
    %217 = vector.shape_cast %216 : vector<8xf32> to vector<8x1xf32>
    %218 = vector.broadcast %217 : vector<8x1xf32> to vector<8x4xf32>
    %219 = arith.subf %215, %218 : vector<8x4xf32>
    %220 = math.exp %219 : vector<8x4xf32>
    %cst_66 = arith.constant dense<0.000000e+00> : vector<8xf32>
    %221 = vector.multi_reduction <add>, %220, %cst_66 [1] : vector<8x4xf32> to vector<8xf32>
    %222 = vector.shape_cast %221 : vector<8xf32> to vector<8x1xf32>
    %223 = math.log %222 : vector<8x1xf32>
    %224 = arith.addf %223, %217 : vector<8x1xf32>
    %225 = vector.broadcast %224 : vector<8x1xf32> to vector<8x4xf32>
    %226 = arith.subf %215, %225 : vector<8x4xf32>
    %cst_67 = arith.constant 0.000000e+00 : f32
    %227 = vector.broadcast %cst_67 : f32 to vector<8x124xf32>
    %228 = tpu.concatenate %226, %227 in 1 : vector<8x4xf32>, vector<8x124xf32> -> vector<8x128xf32>
    %c1_68 = arith.constant 1 : index
    %c0_69 = arith.constant 0 : index
    %c0_70 = arith.constant 0 : index
    %229 = vector.load %arg5[%c1_68, %c0_69, %c0_70] : memref<2x8x128xf32, #tpu.memory_space<vmem>>, vector<1x8x128xf32>
    %230 = vector.shape_cast %229 : vector<1x8x128xf32> to vector<8x128xf32>
    %231 = vector.shape_cast %228 : vector<8x128xf32> to vector<1x8x128xf32>
    tpu.vector_store %arg5[%c1_68, %c0_69, %c0_70], %231 {strides = array<i32>} : memref<2x8x128xf32, #tpu.memory_space<vmem>>, vector<1x8x128xf32>,
    return
  }
  func.func @transform_0(%arg0: i32) -> (i32, i32) {
    %c0_i32 = arith.constant 0 : i32
    %c0_i32_0 = arith.constant 0 : i32
    return %arg0, %c0_i32 : i32, i32
  }
  func.func @transform_1(%arg0: i32) -> (i32, i32) {
    %c0_i32 = arith.constant 0 : i32
    %c0_i32_0 = arith.constant 0 : i32
    %c0_i32_1 = arith.constant 0 : i32
    return %c0_i32, %c0_i32_0 : i32, i32
  }
  func.func @transform_2(%arg0: i32) -> (i32, i32) {
    %c0_i32 = arith.constant 0 : i32
    %c0_i32_0 = arith.constant 0 : i32
    %c0_i32_1 = arith.constant 0 : i32
    return %c0_i32, %c0_i32_0 : i32, i32
  }
  func.func @transform_3(%arg0: i32) -> (i32, i32, i32) {
    %c0_i32 = arith.constant 0 : i32
    %c0_i32_0 = arith.constant 0 : i32
    %c0_i32_1 = arith.constant 0 : i32
    return %arg0, %c0_i32, %c0_i32_0 : i32, i32, i32
  }
  func.func @transform_4(%arg0: i32) -> (i32, i32, i32) {
    %c0_i32 = arith.constant 0 : i32
    %c0_i32_0 = arith.constant 0 : i32
    %c0_i32_1 = arith.constant 0 : i32
    return %arg0, %c0_i32, %c0_i32_0 : i32, i32, i32
  }
}

</mosaic_0001>

<llo_original>
// kernel: tpu_custom_call.1
$region0: #{tpu_custom_call.1}
  #allocation0 [shape = 'u32[]', space=smem, size = 0x4, offset = 0x4, fixed_abs, tag = 'smem constant byte address 0x4 - core index']
  #allocation1 [shape = 'u32[72,128]{1,0:T(1,128)}', space=vmem, size = 0x9000, scoped, tag = 'internal scratch']
  %s0 = inlined_call_operand.vmem [shape: bf16[16,16], index: 0, kind: input, shape index: {}]
  %s1 = inlined_call_operand.hbm [shape: bf16[16,20], index: 1, kind: input, shape index: {}]
  %s2 = inlined_call_operand.vmem [shape: bf16[16,6], index: 2, kind: input, shape index: {}]
  %s3 = inlined_call_operand.vmem [shape: s8[2,8,8], index: 3, kind: input, shape index: {}]
  %s4 = inlined_call_operand.hbm [shape: f32[2,8,128], index: 4, kind: output, shape index: {}]
  %s5 = sld [smem:[#allocation0]]
  $region30: #{tpu_custom_call.1} parent=0
    _
  %s7 = ssub.s32 1, %s5
  %s8 = scalar_select 0, %s7, %s5
  $region1: #{tpu_custom_call.1} parent=0
    #allocation2 [shape = 'u8[4096]{0}', space=vmem, size = 0x1000, scoped, tag = 'input window, operand 1, single buffered']
    #allocation3 [shape = 's32[1]{0}', space=sflag, size = 0x4, scoped, tag = 'scoped memory for tpu_custom_call.1']
    #allocation4 [shape = 's32[1]{0}', space=sflag, size = 0x4, scoped, tag = 'scoped memory for tpu_custom_call.1']
    #allocation5 [shape = 'u8[8192]{0}', space=vmem, size = 0x2000, scoped, tag = 'output window, operand 0, single buffered']
    %9 = vsyncpa [#allocation3], 0
    %10 = vsyncpa [#allocation4], 0
    // Predicated region
    $region2: #{tpu_custom_call.1} parent=1 // pred_check
      _
    $region3: #{tpu_custom_call.1} parent=1 // pred_check_branch
      %12 = sbr.rel (0) target = $region5
    $region4: #{tpu_custom_call.1} parent=1 // pred_region
      _
    $region5: #{tpu_custom_call.1} parent=1 // pred_fallthru
      _
    // Predicated region
    $region6: #{tpu_custom_call.1} parent=1 // pred_check
      _
    $region7: #{tpu_custom_call.1} parent=1 // pred_check_branch
      %14 = sbr.rel (0) target = $region9
    $region8: #{tpu_custom_call.1} parent=1 // pred_region
      %16 = vsyncadd [#allocation3], 0
      %s17 = sshll.u32 %s1, 4
      %s18 = int_to_ptr.hbm [resolvable:$true] %s17
      %s19 = sshll.u32 [#allocation2], 4
      %s20 = int_to_ptr.vmem [resolvable:$true] %s19
      %25 = dma.hbm_to_vmem [thread:$0]  %s18, 128, %s20, [#allocation3], 64, 64, 4
    $region9: #{tpu_custom_call.1} parent=1 // pred_fallthru
      _
    // Predicated region
    $region10: #{tpu_custom_call.1} parent=1 // pred_check
      _
    $region11: #{tpu_custom_call.1} parent=1 // pred_check_branch
      %27 = sbr.rel (0) target = $region13
    $region12: #{tpu_custom_call.1} parent=1 // pred_region
      _
    $region13: #{tpu_custom_call.1} parent=1 // pred_fallthru
      _
    // Predicated region
    $region14: #{tpu_custom_call.1} parent=1 // pred_check
      _
    $region15: #{tpu_custom_call.1} parent=1 // pred_check_branch
      %29 = sbr.rel (0) target = $region17
    $region16: #{tpu_custom_call.1} parent=1 // pred_region
      _
    $region17: #{tpu_custom_call.1} parent=1 // pred_fallthru
      _
    // Predicated region
    $region18: #{tpu_custom_call.1} parent=1 // pred_check
      _
    $region19: #{tpu_custom_call.1} parent=1 // pred_check_branch
      %31 = sbr.rel (0) target = $region21
    $region20: #{tpu_custom_call.1} parent=1 // pred_region
      %33 = dma.done [#allocation3], 128
    $region21: #{tpu_custom_call.1} parent=1 // pred_fallthru
      _
    %v37 = vld [vmem:[%s0] sm:$0xf]
    %v38 = vld [vmem:[%s0 + $0x4] sm:$0xf]
    %v39 = vld [vmem:[#allocation2] sm:$0xf]
    %v40 = vld [vmem:[#allocation2 + $0x4] sm:$0xf]
    %v43 = vunpack.c.l.b16 %v37
    %v44 = vunpack.c.l.b16 %v38
    %v45 = vpack.c.b16 %v44, %v43
    %v48 = vunpack.c.l.b16 %v39
    %v49 = vunpack.c.l.b16 %v40
    %v50 = vpack.c.b16 %v49, %v48
    %vm52 = vcmask 130048
    %v54 = vsel %vm52, %v45, 0
    %56 = vmatpush.bf16.msra.mxu0 0
    %57 = vmatpush.bf16.msra.mxu0 0
    %58 = vmatpush.bf16.msra.mxu0 0
    %59 = vmatpush.bf16.msra.mxu0 0
    %60 = vmatpush.bf16.msra.mxu0 0
    %61 = vmatpush.bf16.msra.mxu0 0
    %62 = vmatpush.bf16.msra.mxu0 0
    %63 = vmatpush.bf16.msra.mxu0 %v50
    %64 = vmatmul.bf16.gmra.mxu0 %v54
    %v65 = vpop.f32.mrf.mxu0
    %v66 = vadd.f32 0.0, %v65
    %v67 = vpop.f32.mrf.mxu0
    %v68 = vadd.f32 0.0, %v67
    %69 = vdwg.mxu0
    %v70 = vld [vmem:[%s2] sm:$0xf]
    %v71 = vld [vmem:[%s2 + $0x4] sm:$0xf]
    %v72 = vld [vmem:[%s3] sm:$0x3]
    %vm73 = vnez %v72
    %75 = vrot.lane.b32.xlu0 %v66, 111
    %v76 = vpop.permute.xlu0 %75
    %78 = vxpose.xlu0.b32.start [1/16] %v76, 128
    %79 = vxpose.xlu0.b32.cont [2/16] 0.0, 128
    %80 = vxpose.xlu0.b32.cont [3/16] 0.0, 128
    %81 = vxpose.xlu0.b32.cont [4/16] 0.0, 128
    %82 = vxpose.xlu0.b32.cont [5/16] 0.0, 128
    %83 = vxpose.xlu0.b32.cont [6/16] 0.0, 128
    %84 = vxpose.xlu0.b32.cont [7/16] 0.0, 128
    %85 = vxpose.xlu0.b32.cont [8/16] 0.0, 128
    %86 = vxpose.xlu0.b32.cont [9/16] 0.0, 128
    %87 = vxpose.xlu0.b32.cont [10/16] 0.0, 128
    %88 = vxpose.xlu0.b32.cont [11/16] 0.0, 128
    %89 = vxpose.xlu0.b32.cont [12/16] 0.0, 128
    %90 = vxpose.xlu0.b32.cont [13/16] 0.0, 128
    %91 = vxpose.xlu0.b32.cont [14/16] 0.0, 128
    %92 = vxpose.xlu0.b32.cont [15/16] 0.0, 128
    %93 = vxpose.xlu0.b32.end [16/16] 0.0, 128
    %v94 = vpop.trf.xlu0
    %v95 = vpop.trf.xlu0
    %v96 = vpop.trf.xlu0
    %v97 = vpop.trf.xlu0
    %v98 = vpop.trf.xlu0
    %v99 = vpop.trf.xlu0
    %v100 = vpop.trf.xlu0
    %v101 = vpop.trf.xlu0
    %v102 = vpop.trf.xlu0
    %v103 = vpop.trf.xlu0
    %v104 = vpop.trf.xlu0
    %v105 = vpop.trf.xlu0
    %v106 = vpop.trf.xlu0
    %v107 = vpop.trf.xlu0
    %v108 = vpop.trf.xlu0
    %v109 = vpop.trf.xlu0
    %110 = vset.pattern.permute.xlu0 16
    %111 = vperm.xlu0 %110, %v66
    %v112 = vpop.permute.xlu0 %111
    %v114 = vperm.slane %v94, 0
    %v115 = vadd.f32 %v112, %v114
    %vm116 = vcmp.ge.f32.partialorder %v115, 0.0
    %v117 = vmul.f32 %v115, 0.2
    %v118 = vsel %vm116, %v115, %v117
    %v119 = vsel %vm73, 16843009, 0
    %v120 = vunpack.c.0.s8 %v119
    %vm121 = vcmp.ne.s32.totalorder %v120, 0
    %v122 = vsel %vm121, %v118, -1e+12
    %vm123 = vcmask 64512
    %v124 = vsel %vm123, %v122, -inf
    %v125 = vrot.slane %v124, 4
    %v126 = vmax.f32 %v124, %v125
    %v127 = vrot.slane %v126, 2
    %v128 = vmax.f32 %v126, %v127
    %v129 = vrot.slane %v128, 1
    %v130 = vmax.f32 %v128, %v129
    %v131 = vsub.f32 %v122, %v130
    %v132 = vmul.f32 %v131, 1.442695
    %v133 = vpow.pop %v132
    %v134 = vsel %vm123, %v133, 0.0
    %v135 = vrot.slane %v134, 4
    %v136 = vadd.f32 %v134, %v135
    %v137 = vrot.slane %v136, 2
    %v138 = vadd.f32 %v136, %v137
    %v139 = vrot.slane %v138, 1
    %v140 = vadd.f32 %v138, %v139
    %v141 = vrcp.pop %v140
    %v142 = vmul.f32 %v140, %v141
    %v143 = vsub.f32 1.0, %v142
    %v144 = vmul.f32 %v141, %v143
    %v145 = vadd.f32 %v141, %v144
    %vm146 = vweird.f32 %v140
    %vm147 = vweird.f32 %v141
    %vm148 = vmor %vm146, %vm147
    %v149 = vsel %vm148, %v141, %v145
    %v150 = vand.u32 2147483647, %v140
    %vm151 = vcmp.eq.f32.partialorder %v150, 8.507059e+37
    %v152 = vand.u32 %v140, 2147483648
    %v153 = vor.u32 1.1754944e-38, %v152
    %v154 = vsel %vm151, %v153, %v149
    %v155 = vmul.f32 %v133, %v154
    %v156 = vpack.c.bf16 %v155, %v155
    %v157 = vpack.c.bf16 %v66, %v66
    %v159 = vsel %vm123, %v156, 0
    %vm161 = vcmask 1043456
    %v163 = vsel %vm161, %v157, 0
    %165 = vmatpush.bf16.msra.mxu0 0
    %166 = vmatpush.bf16.msra.mxu0 0
    %167 = vmatpush.bf16.msra.mxu0 0
    %168 = vmatpush.bf16.msra.mxu0 0
    %169 = vmatpush.bf16.msra.mxu0 0
    %170 = vmatpush.bf16.msra.mxu0 0
    %171 = vmatpush.bf16.msra.mxu0 0
    %172 = vmatpush.bf16.msra.mxu0 %v163
    %173 = vmatmul.bf16.gmra.mxu0 %v159
    %v174 = vpop.f32.mrf.mxu0
    %v175 = vadd.f32 0.0, %v174
    %v176 = vpop.f32.mrf.mxu0
    %177 = vdwg.mxu0
    %v178 = vmax.f32 %v175, 0.0
    %179 = vrot.lane.b32.xlu0 %v66, 109
    %v180 = vpop.permute.xlu0 %179
    %182 = vxpose.xlu0.b32.start [1/16] %v180, 128
    %183 = vxpose.xlu0.b32.cont [2/16] 0.0, 128
    %184 = vxpose.xlu0.b32.cont [3/16] 0.0, 128
    %185 = vxpose.xlu0.b32.cont [4/16] 0.0, 128
    %186 = vxpose.xlu0.b32.cont [5/16] 0.0, 128
    %187 = vxpose.xlu0.b32.cont [6/16] 0.0, 128
    %188 = vxpose.xlu0.b32.cont [7/16] 0.0, 128
    %189 = vxpose.xlu0.b32.cont [8/16] 0.0, 128
    %190 = vxpose.xlu0.b32.cont [9/16] 0.0, 128
    %191 = vxpose.xlu0.b32.cont [10/16] 0.0, 128
    %192 = vxpose.xlu0.b32.cont [11/16] 0.0, 128
    %193 = vxpose.xlu0.b32.cont [12/16] 0.0, 128
    %194 = vxpose.xlu0.b32.cont [13/16] 0.0, 128
    %195 = vxpose.xlu0.b32.cont [14/16] 0.0, 128
    %196 = vxpose.xlu0.b32.cont [15/16] 0.0, 128
    %197 = vxpose.xlu0.b32.end [16/16] 0.0, 128
    %v198 = vpop.trf.xlu0
    %v199 = vpop.trf.xlu0
    %v200 = vpop.trf.xlu0
    %v201 = vpop.trf.xlu0
    %v202 = vpop.trf.xlu0
    %v203 = vpop.trf.xlu0
    %v204 = vpop.trf.xlu0
    %v205 = vpop.trf.xlu0
    %v206 = vpop.trf.xlu0
    %v207 = vpop.trf.xlu0
    %v208 = vpop.trf.xlu0
    %v209 = vpop.trf.xlu0
    %v210 = vpop.trf.xlu0
    %v211 = vpop.trf.xlu0
    %v212 = vpop.trf.xlu0
    %v213 = vpop.trf.xlu0
    %214 = vset.pattern.permute.xlu0 18
    %215 = vperm.xlu0 %214, %v66
    %v216 = vpop.permute.xlu0 %215
    %v218 = vperm.slane %v198, 0
    %v219 = vadd.f32 %v216, %v218
    %vm220 = vcmp.ge.f32.partialorder %v219, 0.0
    %v221 = vmul.f32 %v219, 0.2
    %v222 = vsel %vm220, %v219, %v221
    %v223 = vsel %vm121, %v222, -1e+12
    %v224 = vsel %vm123, %v223, -inf
    %v225 = vrot.slane %v224, 4
    %v226 = vmax.f32 %v224, %v225
    %v227 = vrot.slane %v226, 2
    %v228 = vmax.f32 %v226, %v227
    %v229 = vrot.slane %v228, 1
    %v230 = vmax.f32 %v228, %v229
    %v231 = vsub.f32 %v223, %v230
    %v232 = vmul.f32 %v231, 1.442695
    %v233 = vpow.pop %v232
    %v234 = vsel %vm123, %v233, 0.0
    %v235 = vrot.slane %v234, 4
    %v236 = vadd.f32 %v234, %v235
    %v237 = vrot.slane %v236, 2
    %v238 = vadd.f32 %v236, %v237
    %v239 = vrot.slane %v238, 1
    %v240 = vadd.f32 %v238, %v239
    %v241 = vrcp.pop %v240
    %v242 = vmul.f32 %v240, %v241
    %v243 = vsub.f32 1.0, %v242
    %v244 = vmul.f32 %v241, %v243
    %v245 = vadd.f32 %v241, %v244
    %vm246 = vweird.f32 %v240
    %vm247 = vweird.f32 %v241
    %vm248 = vmor %vm246, %vm247
    %v249 = vsel %vm248, %v241, %v245
    %v250 = vand.u32 2147483647, %v240
    %vm251 = vcmp.eq.f32.partialorder %v250, 8.507059e+37
    %v252 = vand.u32 %v240, 2147483648
    %v253 = vor.u32 1.1754944e-38, %v252
    %v254 = vsel %vm251, %v253, %v249
    %v255 = vmul.f32 %v233, %v254
    %v256 = vpack.c.bf16 %v255, %v255
    %258 = vrot.lane.b32.xlu0 %v157, 120
    %v259 = vpop.permute.xlu0 %258
    %v261 = vsel %vm123, %v256, 0
    %v264 = vsel %vm161, %v259, 0
    %266 = vmatpush.bf16.msra.mxu0 0
    %267 = vmatpush.bf16.msra.mxu0 0
    %268 = vmatpush.bf16.msra.mxu0 0
    %269 = vmatpush.bf16.msra.mxu0 0
    %270 = vmatpush.bf16.msra.mxu0 0
    %271 = vmatpush.bf16.msra.mxu0 0
    %272 = vmatpush.bf16.msra.mxu0 0
    %273 = vmatpush.bf16.msra.mxu0 %v264
    %274 = vmatmul.bf16.gmra.mxu0 %v261
    %v275 = vpop.f32.mrf.mxu0
    %v276 = vadd.f32 0.0, %v275
    %v277 = vpop.f32.mrf.mxu0
    %278 = vdwg.mxu0
    %v279 = vmax.f32 %v276, 0.0
    %281 = vrot.lane.b32.xlu0 %v279, 8
    %v282 = vpop.permute.xlu0 %281
    %v284 = vsel %vm123, %v178, %v282
    %v285 = vpack.c.bf16 %v284, %v284
    %v288 = vunpack.c.l.b16 %v70
    %v289 = vunpack.c.l.b16 %v71
    %v290 = vpack.c.b16 %v289, %v288
    %v293 = vsel %vm52, %v285, 0
    %295 = vmatpush.bf16.msra.mxu0 0
    %296 = vmatpush.bf16.msra.mxu0 0
    %297 = vmatpush.bf16.msra.mxu0 0
    %298 = vmatpush.bf16.msra.mxu0 0
    %299 = vmatpush.bf16.msra.mxu0 0
    %300 = vmatpush.bf16.msra.mxu0 0
    %301 = vmatpush.bf16.msra.mxu0 0
    %302 = vmatpush.bf16.msra.mxu0 %v290
    %303 = vmatmul.bf16.gmra.mxu0 %v293
    %v304 = vpop.f32.mrf.mxu0
    %v305 = vadd.f32 0.0, %v304
    %v306 = vpop.f32.mrf.mxu0
    %307 = vdwg.mxu0
    %309 = vrot.lane.b32.xlu0 %v305, 123
    %v310 = vpop.permute.xlu0 %309
    %312 = vxpose.xlu0.b32.start [1/16] %v310, 128
    %313 = vxpose.xlu0.b32.cont [2/16] 0.0, 128
    %314 = vxpose.xlu0.b32.cont [3/16] 0.0, 128
    %315 = vxpose.xlu0.b32.cont [4/16] 0.0, 128
    %316 = vxpose.xlu0.b32.cont [5/16] 0.0, 128
    %317 = vxpose.xlu0.b32.cont [6/16] 0.0, 128
    %318 = vxpose.xlu0.b32.cont [7/16] 0.0, 128
    %319 = vxpose.xlu0.b32.cont [8/16] 0.0, 128
    %320 = vxpose.xlu0.b32.cont [9/16] 0.0, 128
    %321 = vxpose.xlu0.b32.cont [10/16] 0.0, 128
    %322 = vxpose.xlu0.b32.cont [11/16] 0.0, 128
    %323 = vxpose.xlu0.b32.cont [12/16] 0.0, 128
    %324 = vxpose.xlu0.b32.cont [13/16] 0.0, 128
    %325 = vxpose.xlu0.b32.cont [14/16] 0.0, 128
    %326 = vxpose.xlu0.b32.cont [15/16] 0.0, 128
    %327 = vxpose.xlu0.b32.end [16/16] 0.0, 128
    %v328 = vpop.trf.xlu0
    %v329 = vpop.trf.xlu0
    %v330 = vpop.trf.xlu0
    %v331 = vpop.trf.xlu0
    %v332 = vpop.trf.xlu0
    %v333 = vpop.trf.xlu0
    %v334 = vpop.trf.xlu0
    %v335 = vpop.trf.xlu0
    %v336 = vpop.trf.xlu0
    %v337 = vpop.trf.xlu0
    %v338 = vpop.trf.xlu0
    %v339 = vpop.trf.xlu0
    %v340 = vpop.trf.xlu0
    %v341 = vpop.trf.xlu0
    %v342 = vpop.trf.xlu0
    %v343 = vpop.trf.xlu0
    %344 = vset.pattern.permute.xlu0 4
    %345 = vperm.xlu0 %344, %v305
    %v346 = vpop.permute.xlu0 %345
    %v348 = vperm.slane %v328, 0
    %v349 = vadd.f32 %v346, %v348
    %vm350 = vcmp.ge.f32.partialorder %v349, 0.0
    %v351 = vmul.f32 %v349, 0.2
    %v352 = vsel %vm350, %v349, %v351
    %v353 = vsel %vm121, %v352, -1e+12
    %v354 = vsel %vm123, %v353, -inf
    %v355 = vrot.slane %v354, 4
    %v356 = vmax.f32 %v354, %v355
    %v357 = vrot.slane %v356, 2
    %v358 = vmax.f32 %v356, %v357
    %v359 = vrot.slane %v358, 1
    %v360 = vmax.f32 %v358, %v359
    %v361 = vsub.f32 %v353, %v360
    %v362 = vmul.f32 %v361, 1.442695
    %v363 = vpow.pop %v362
    %v364 = vsel %vm123, %v363, 0.0
    %v365 = vrot.slane %v364, 4
    %v366 = vadd.f32 %v364, %v365
    %v367 = vrot.slane %v366, 2
    %v368 = vadd.f32 %v366, %v367
    %v369 = vrot.slane %v368, 1
    %v370 = vadd.f32 %v368, %v369
    %v371 = vrcp.pop %v370
    %v372 = vmul.f32 %v370, %v371
    %v373 = vsub.f32 1.0, %v372
    %v374 = vmul.f32 %v371, %v373
    %v375 = vadd.f32 %v371, %v374
    %vm376 = vweird.f32 %v370
    %vm377 = vweird.f32 %v371
    %vm378 = vmor %vm376, %vm377
    %v379 = vsel %vm378, %v371, %v375
    %v380 = vand.u32 2147483647, %v370
    %vm381 = vcmp.eq.f32.partialorder %v380, 8.507059e+37
    %v382 = vand.u32 %v370, 2147483648
    %v383 = vor.u32 1.1754944e-38, %v382
    %v384 = vsel %vm381, %v383, %v379
    %v385 = vmul.f32 %v363, %v384
    %v386 = vpack.c.bf16 %v385, %v385
    %v387 = vpack.c.bf16 %v305, %v305
    %v389 = vsel %vm123, %v386, 0
    %v392 = vsel %vm161, %v387, 0
    %394 = vmatpush.bf16.msra.mxu0 0
    %395 = vmatpush.bf16.msra.mxu0 0
    %396 = vmatpush.bf16.msra.mxu0 0
    %397 = vmatpush.bf16.msra.mxu0 0
    %398 = vmatpush.bf16.msra.mxu0 0
    %399 = vmatpush.bf16.msra.mxu0 0
    %400 = vmatpush.bf16.msra.mxu0 0
    %401 = vmatpush.bf16.msra.mxu0 %v392
    %402 = vmatmul.bf16.gmra.mxu0 %v389
    %v403 = vpop.f32.mrf.mxu0
    %v404 = vadd.f32 0.0, %v403
    %v405 = vpop.f32.mrf.mxu0
    %406 = vdwg.mxu0
    %vm407 = vcmp.gt.f32.partialorder %v404, 0.0
    %v408 = vmin.f32 %v404, 0.0
    %v409 = vmul.f32 %v408, 1.442695
    %v410 = vpow.pop %v409
    %v411 = vsub.f32 %v410, 1.0
    %v412 = vsel %vm407, %v404, %v411
    %vm413 = vcmask 31744
    %v414 = vsel %vm413, %v412, -inf
    %415 = vmax.xlane.f32.xlu0 %v414
    %v416 = vpop.xlane.xlu0 %415
    %v417 = vsub.f32 %v412, %v416
    %v418 = vmul.f32 %v417, 1.442695
    %v419 = vpow.pop %v418
    %v420 = vsel %vm413, %v419, 0.0
    %421 = vadd.xlane.f32.xlu0 %v420
    %v422 = vpop.xlane.xlu0 %421
    %v423 = vlog2.pop %v422
    %v424 = vmul.f32 %v423, 0.6931472
    %v425 = vadd.f32 %v424, %v416
    %v426 = vsub.f32 %v412, %v425
    %v427 = vsel %vm413, %v426, 0.0
    %428 = vst [vmem:[#allocation5] sm:$0xff] %v427
    %s429 = scalar_lea.vmem %s3, 2
    %v430 = vld [vmem:[%s429] sm:$0x3]
    %vm431 = vnez %v430
    %433 = vrot.lane.b32.xlu0 %v68, 111
    %v434 = vpop.permute.xlu0 %433
    %436 = vxpose.xlu0.b32.start [1/16] %v434, 128
    %437 = vxpose.xlu0.b32.cont [2/16] 0.0, 128
    %438 = vxpose.xlu0.b32.cont [3/16] 0.0, 128
    %439 = vxpose.xlu0.b32.cont [4/16] 0.0, 128
    %440 = vxpose.xlu0.b32.cont [5/16] 0.0, 128
    %441 = vxpose.xlu0.b32.cont [6/16] 0.0, 128
    %442 = vxpose.xlu0.b32.cont [7/16] 0.0, 128
    %443 = vxpose.xlu0.b32.cont [8/16] 0.0, 128
    %444 = vxpose.xlu0.b32.cont [9/16] 0.0, 128
    %445 = vxpose.xlu0.b32.cont [10/16] 0.0, 128
    %446 = vxpose.xlu0.b32.cont [11/16] 0.0, 128
    %447 = vxpose.xlu0.b32.cont [12/16] 0.0, 128
    %448 = vxpose.xlu0.b32.cont [13/16] 0.0, 128
    %449 = vxpose.xlu0.b32.cont [14/16] 0.0, 128
    %450 = vxpose.xlu0.b32.cont [15/16] 0.0, 128
    %451 = vxpose.xlu0.b32.end [16/16] 0.0, 128
    %v452 = vpop.trf.xlu0
    %v453 = vpop.trf.xlu0
    %v454 = vpop.trf.xlu0
    %v455 = vpop.trf.xlu0
    %v456 = vpop.trf.xlu0
    %v457 = vpop.trf.xlu0
    %v458 = vpop.trf.xlu0
    %v459 = vpop.trf.xlu0
    %v460 = vpop.trf.xlu0
    %v461 = vpop.trf.xlu0
    %v462 = vpop.trf.xlu0
    %v463 = vpop.trf.xlu0
    %v464 = vpop.trf.xlu0
    %v465 = vpop.trf.xlu0
    %v466 = vpop.trf.xlu0
    %v467 = vpop.trf.xlu0
    %468 = vset.pattern.permute.xlu0 16
    %469 = vperm.xlu0 %468, %v68
    %v470 = vpop.permute.xlu0 %469
    %v472 = vperm.slane %v452, 0
    %v473 = vadd.f32 %v470, %v472
    %vm474 = vcmp.ge.f32.partialorder %v473, 0.0
    %v475 = vmul.f32 %v473, 0.2
    %v476 = vsel %vm474, %v473, %v475
    %v477 = vsel %vm431, 16843009, 0
    %v478 = vunpack.c.0.s8 %v477
    %vm479 = vcmp.ne.s32.totalorder %v478, 0
    %v480 = vsel %vm479, %v476, -1e+12
    %v481 = vsel %vm123, %v480, -inf
    %v482 = vrot.slane %v481, 4
    %v483 = vmax.f32 %v481, %v482
    %v484 = vrot.slane %v483, 2
    %v485 = vmax.f32 %v483, %v484
    %v486 = vrot.slane %v485, 1
    %v487 = vmax.f32 %v485, %v486
    %v488 = vsub.f32 %v480, %v487
    %v489 = vmul.f32 %v488, 1.442695
    %v490 = vpow.pop %v489
    %v491 = vsel %vm123, %v490, 0.0
    %v492 = vrot.slane %v491, 4
    %v493 = vadd.f32 %v491, %v492
    %v494 = vrot.slane %v493, 2
    %v495 = vadd.f32 %v493, %v494
    %v496 = vrot.slane %v495, 1
    %v497 = vadd.f32 %v495, %v496
    %v498 = vrcp.pop %v497
    %v499 = vmul.f32 %v497, %v498
    %v500 = vsub.f32 1.0, %v499
    %v501 = vmul.f32 %v498, %v500
    %v502 = vadd.f32 %v498, %v501
    %vm503 = vweird.f32 %v497
    %vm504 = vweird.f32 %v498
    %vm505 = vmor %vm503, %vm504
    %v506 = vsel %vm505, %v498, %v502
    %v507 = vand.u32 2147483647, %v497
    %vm508 = vcmp.eq.f32.partialorder %v507, 8.507059e+37
    %v509 = vand.u32 %v497, 2147483648
    %v510 = vor.u32 1.1754944e-38, %v509
    %v511 = vsel %vm508, %v510, %v506
    %v512 = vmul.f32 %v490, %v511
    %v513 = vpack.c.bf16 %v512, %v512
    %v514 = vpack.c.bf16 %v68, %v68
    %v516 = vsel %vm123, %v513, 0
    %v519 = vsel %vm161, %v514, 0
    %521 = vmatpush.bf16.msra.mxu0 0
    %522 = vmatpush.bf16.msra.mxu0 0
    %523 = vmatpush.bf16.msra.mxu0 0
    %524 = vmatpush.bf16.msra.mxu0 0
    %525 = vmatpush.bf16.msra.mxu0 0
    %526 = vmatpush.bf16.msra.mxu0 0
    %527 = vmatpush.bf16.msra.mxu0 0
    %528 = vmatpush.bf16.msra.mxu0 %v519
    %529 = vmatmul.bf16.gmra.mxu0 %v516
    %v530 = vpop.f32.mrf.mxu0
    %v531 = vadd.f32 0.0, %v530
    %v532 = vpop.f32.mrf.mxu0
    %533 = vdwg.mxu0
    %v534 = vmax.f32 %v531, 0.0
    %535 = vrot.lane.b32.xlu0 %v68, 109
    %v536 = vpop.permute.xlu0 %535
    %538 = vxpose.xlu0.b32.start [1/16] %v536, 128
    %539 = vxpose.xlu0.b32.cont [2/16] 0.0, 128
    %540 = vxpose.xlu0.b32.cont [3/16] 0.0, 128
    %541 = vxpose.xlu0.b32.cont [4/16] 0.0, 128
    %542 = vxpose.xlu0.b32.cont [5/16] 0.0, 128
    %543 = vxpose.xlu0.b32.cont [6/16] 0.0, 128
    %544 = vxpose.xlu0.b32.cont [7/16] 0.0, 128
    %545 = vxpose.xlu0.b32.cont [8/16] 0.0, 128
    %546 = vxpose.xlu0.b32.cont [9/16] 0.0, 128
    %547 = vxpose.xlu0.b32.cont [10/16] 0.0, 128
    %548 = vxpose.xlu0.b32.cont [11/16] 0.0, 128
    %549 = vxpose.xlu0.b32.cont [12/16] 0.0, 128
    %550 = vxpose.xlu0.b32.cont [13/16] 0.0, 128
    %551 = vxpose.xlu0.b32.cont [14/16] 0.0, 128
    %552 = vxpose.xlu0.b32.cont [15/16] 0.0, 128
    %553 = vxpose.xlu0.b32.end [16/16] 0.0, 128
    %v554 = vpop.trf.xlu0
    %v555 = vpop.trf.xlu0
    %v556 = vpop.trf.xlu0
    %v557 = vpop.trf.xlu0
    %v558 = vpop.trf.xlu0
    %v559 = vpop.trf.xlu0
    %v560 = vpop.trf.xlu0
    %v561 = vpop.trf.xlu0
    %v562 = vpop.trf.xlu0
    %v563 = vpop.trf.xlu0
    %v564 = vpop.trf.xlu0
    %v565 = vpop.trf.xlu0
    %v566 = vpop.trf.xlu0
    %v567 = vpop.trf.xlu0
    %v568 = vpop.trf.xlu0
    %v569 = vpop.trf.xlu0
    %570 = vset.pattern.permute.xlu0 18
    %571 = vperm.xlu0 %570, %v68
    %v572 = vpop.permute.xlu0 %571
    %v574 = vperm.slane %v554, 0
    %v575 = vadd.f32 %v572, %v574
    %vm576 = vcmp.ge.f32.partialorder %v575, 0.0
    %v577 = vmul.f32 %v575, 0.2
    %v578 = vsel %vm576, %v575, %v577
    %v579 = vsel %vm479, %v578, -1e+12
    %v580 = vsel %vm123, %v579, -inf
    %v581 = vrot.slane %v580, 4
    %v582 = vmax.f32 %v580, %v581
    %v583 = vrot.slane %v582, 2
    %v584 = vmax.f32 %v582, %v583
    %v585 = vrot.slane %v584, 1
    %v586 = vmax.f32 %v584, %v585
    %v587 = vsub.f32 %v579, %v586
    %v588 = vmul.f32 %v587, 1.442695
    %v589 = vpow.pop %v588
    %v590 = vsel %vm123, %v589, 0.0
    %v591 = vrot.slane %v590, 4
    %v592 = vadd.f32 %v590, %v591
    %v593 = vrot.slane %v592, 2
    %v594 = vadd.f32 %v592, %v593
    %v595 = vrot.slane %v594, 1
    %v596 = vadd.f32 %v594, %v595
    %v597 = vrcp.pop %v596
    %v598 = vmul.f32 %v596, %v597
    %v599 = vsub.f32 1.0, %v598
    %v600 = vmul.f32 %v597, %v599
    %v601 = vadd.f32 %v597, %v600
    %vm602 = vweird.f32 %v596
    %vm603 = vweird.f32 %v597
    %vm604 = vmor %vm602, %vm603
    %v605 = vsel %vm604, %v597, %v601
    %v606 = vand.u32 2147483647, %v596
    %vm607 = vcmp.eq.f32.partialorder %v606, 8.507059e+37
    %v608 = vand.u32 %v596, 2147483648
    %v609 = vor.u32 1.1754944e-38, %v608
    %v610 = vsel %vm607, %v609, %v605
    %v611 = vmul.f32 %v589, %v610
    %v612 = vpack.c.bf16 %v611, %v611
    %614 = vrot.lane.b32.xlu0 %v514, 120
    %v615 = vpop.permute.xlu0 %614
    %v617 = vsel %vm123, %v612, 0
    %v620 = vsel %vm161, %v615, 0
    %622 = vmatpush.bf16.msra.mxu0 0
    %623 = vmatpush.bf16.msra.mxu0 0
    %624 = vmatpush.bf16.msra.mxu0 0
    %625 = vmatpush.bf16.msra.mxu0 0
    %626 = vmatpush.bf16.msra.mxu0 0
    %627 = vmatpush.bf16.msra.mxu0 0
    %628 = vmatpush.bf16.msra.mxu0 0
    %629 = vmatpush.bf16.msra.mxu0 %v620
    %630 = vmatmul.bf16.gmra.mxu0 %v617
    %v631 = vpop.f32.mrf.mxu0
    %v632 = vadd.f32 0.0, %v631
    %v633 = vpop.f32.mrf.mxu0
    %634 = vdwg.mxu0
    %v635 = vmax.f32 %v632, 0.0
    %637 = vrot.lane.b32.xlu0 %v635, 8
    %v638 = vpop.permute.xlu0 %637
    %v640 = vsel %vm123, %v534, %v638
    %v641 = vpack.c.bf16 %v640, %v640
    %v643 = vsel %vm52, %v641, 0
    %645 = vmatpush.bf16.msra.mxu0 0
    %646 = vmatpush.bf16.msra.mxu0 0
    %647 = vmatpush.bf16.msra.mxu0 0
    %648 = vmatpush.bf16.msra.mxu0 0
    %649 = vmatpush.bf16.msra.mxu0 0
    %650 = vmatpush.bf16.msra.mxu0 0
    %651 = vmatpush.bf16.msra.mxu0 0
    %652 = vmatpush.bf16.msra.mxu0 %v290
    %653 = vmatmul.bf16.gmra.mxu0 %v643
    %v654 = vpop.f32.mrf.mxu0
    %v655 = vadd.f32 0.0, %v654
    %v656 = vpop.f32.mrf.mxu0
    %657 = vdwg.mxu0
    %659 = vrot.lane.b32.xlu0 %v655, 123
    %v660 = vpop.permute.xlu0 %659
    %662 = vxpose.xlu0.b32.start [1/16] %v660, 128
    %663 = vxpose.xlu0.b32.cont [2/16] 0.0, 128
    %664 = vxpose.xlu0.b32.cont [3/16] 0.0, 128
    %665 = vxpose.xlu0.b32.cont [4/16] 0.0, 128
    %666 = vxpose.xlu0.b32.cont [5/16] 0.0, 128
    %667 = vxpose.xlu0.b32.cont [6/16] 0.0, 128
    %668 = vxpose.xlu0.b32.cont [7/16] 0.0, 128
    %669 = vxpose.xlu0.b32.cont [8/16] 0.0, 128
    %670 = vxpose.xlu0.b32.cont [9/16] 0.0, 128
    %671 = vxpose.xlu0.b32.cont [10/16] 0.0, 128
    %672 = vxpose.xlu0.b32.cont [11/16] 0.0, 128
    %673 = vxpose.xlu0.b32.cont [12/16] 0.0, 128
    %674 = vxpose.xlu0.b32.cont [13/16] 0.0, 128
    %675 = vxpose.xlu0.b32.cont [14/16] 0.0, 128
    %676 = vxpose.xlu0.b32.cont [15/16] 0.0, 128
    %677 = vxpose.xlu0.b32.end [16/16] 0.0, 128
    %v678 = vpop.trf.xlu0
    %v679 = vpop.trf.xlu0
    %v680 = vpop.trf.xlu0
    %v681 = vpop.trf.xlu0
    %v682 = vpop.trf.xlu0
    %v683 = vpop.trf.xlu0
    %v684 = vpop.trf.xlu0
    %v685 = vpop.trf.xlu0
    %v686 = vpop.trf.xlu0
    %v687 = vpop.trf.xlu0
    %v688 = vpop.trf.xlu0
    %v689 = vpop.trf.xlu0
    %v690 = vpop.trf.xlu0
    %v691 = vpop.trf.xlu0
    %v692 = vpop.trf.xlu0
    %v693 = vpop.trf.xlu0
    %694 = vset.pattern.permute.xlu0 4
    %695 = vperm.xlu0 %694, %v655
    %v696 = vpop.permute.xlu0 %695
    %v698 = vperm.slane %v678, 0
    %v699 = vadd.f32 %v696, %v698
    %vm700 = vcmp.ge.f32.partialorder %v699, 0.0
    %v701 = vmul.f32 %v699, 0.2
    %v702 = vsel %vm700, %v699, %v701
    %v703 = vsel %vm479, %v702, -1e+12
    %v704 = vsel %vm123, %v703, -inf
    %v705 = vrot.slane %v704, 4
    %v706 = vmax.f32 %v704, %v705
    %v707 = vrot.slane %v706, 2
    %v708 = vmax.f32 %v706, %v707
    %v709 = vrot.slane %v708, 1
    %v710 = vmax.f32 %v708, %v709
    %v711 = vsub.f32 %v703, %v710
    %v712 = vmul.f32 %v711, 1.442695
    %v713 = vpow.pop %v712
    %v714 = vsel %vm123, %v713, 0.0
    %v715 = vrot.slane %v714, 4
    %v716 = vadd.f32 %v714, %v715
    %v717 = vrot.slane %v716, 2
    %v718 = vadd.f32 %v716, %v717
    %v719 = vrot.slane %v718, 1
    %v720 = vadd.f32 %v718, %v719
    %v721 = vrcp.pop %v720
    %v722 = vmul.f32 %v720, %v721
    %v723 = vsub.f32 1.0, %v722
    %v724 = vmul.f32 %v721, %v723
    %v725 = vadd.f32 %v721, %v724
    %vm726 = vweird.f32 %v720
    %vm727 = vweird.f32 %v721
    %vm728 = vmor %vm726, %vm727
    %v729 = vsel %vm728, %v721, %v725
    %v730 = vand.u32 2147483647, %v720
    %vm731 = vcmp.eq.f32.partialorder %v730, 8.507059e+37
    %v732 = vand.u32 %v720, 2147483648
    %v733 = vor.u32 1.1754944e-38, %v732
    %v734 = vsel %vm731, %v733, %v729
    %v735 = vmul.f32 %v713, %v734
    %v736 = vpack.c.bf16 %v735, %v735
    %v737 = vpack.c.bf16 %v655, %v655
    %v739 = vsel %vm123, %v736, 0
    %v742 = vsel %vm161, %v737, 0
    %744 = vmatpush.bf16.msra.mxu0 0
    %745 = vmatpush.bf16.msra.mxu0 0
    %746 = vmatpush.bf16.msra.mxu0 0
    %747 = vmatpush.bf16.msra.mxu0 0
    %748 = vmatpush.bf16.msra.mxu0 0
    %749 = vmatpush.bf16.msra.mxu0 0
    %750 = vmatpush.bf16.msra.mxu0 0
    %751 = vmatpush.bf16.msra.mxu0 %v742
    %752 = vmatmul.bf16.gmra.mxu0 %v739
    %v753 = vpop.f32.mrf.mxu0
    %v754 = vadd.f32 0.0, %v753
    %v755 = vpop.f32.mrf.mxu0
    %756 = vdwg.mxu0
    %vm757 = vcmp.gt.f32.partialorder %v754, 0.0
    %v758 = vmin.f32 %v754, 0.0
    %v759 = vmul.f32 %v758, 1.442695
    %v760 = vpow.pop %v759
    %v761 = vsub.f32 %v760, 1.0
    %v762 = vsel %vm757, %v754, %v761
    %v763 = vsel %vm413, %v762, -inf
    %764 = vmax.xlane.f32.xlu0 %v763
    %v765 = vpop.xlane.xlu0 %764
    %v766 = vsub.f32 %v762, %v765
    %v767 = vmul.f32 %v766, 1.442695
    %v768 = vpow.pop %v767
    %v769 = vsel %vm413, %v768, 0.0
    %770 = vadd.xlane.f32.xlu0 %v769
    %v771 = vpop.xlane.xlu0 %770
    %v772 = vlog2.pop %v771
    %v773 = vmul.f32 %v772, 0.6931472
    %v774 = vadd.f32 %v773, %v765
    %v775 = vsub.f32 %v762, %v774
    %v776 = vsel %vm413, %v775, 0.0
    %s777 = scalar_lea.vmem [#allocation5], 8
    %778 = vst [vmem:[%s777] sm:$0xff] %v776
    // Predicated region
    $region22: #{tpu_custom_call.1} parent=1 // pred_check
      _
    $region23: #{tpu_custom_call.1} parent=1 // pred_check_branch
      %780 = sbr.rel (0) target = $region25
    $region24: #{tpu_custom_call.1} parent=1 // pred_region
      %782 = vsyncadd [#allocation4], 0
      %s783 = sshll.u32 [#allocation5], 4
      %s784 = int_to_ptr.vmem [resolvable:$true] %s783
      %s785 = sshll.u32 %s4, 4
      %s786 = int_to_ptr.hbm [resolvable:$true] %s785
      %791 = dma.vmem_to_hbm [thread:$0]  %s784, 256, %s786, [#allocation4], 128, 128, 8
    $region25: #{tpu_custom_call.1} parent=1 // pred_fallthru
      _
    // Predicated region
    $region26: #{tpu_custom_call.1} parent=1 // pred_check
      _
    $region27: #{tpu_custom_call.1} parent=1 // pred_check_branch
      %793 = sbr.rel (0) target = $region29
    $region28: #{tpu_custom_call.1} parent=1 // pred_region
      %795 = dma.done [#allocation4], 256
    $region29: #{tpu_custom_call.1} parent=1 // pred_fallthru
      _
    %796 = vsyncpa [#allocation3], 1
    %797 = vsyncpa [#allocation4], 1

</llo_original>
